<compile_context>
chip_gen: v5e
topology: v5e:2x2
jax: 0.10.0
libtpu: 0.0.40
codegen_flags: <defaults>
</compile_context>

<pallas_src>
import numpy as np
import jax
import jax.numpy as jnp
from jax.experimental import pallas as pl
from jax.experimental.pallas import tpu as pltpu

_LANES = 128
_COORD_CH = 4                       # (x, y, z, t)
_PTS_PER_ROW = _LANES // _COORD_CH  # 32 points per lane-dense row
_MAX_TILE_PTS = 32768               # 1024x128 f32 block = 512 KiB per buffer


def _quant_kernel(pcd_ref, quant_ref, coords_ref):
    """coords = floor(pcd / quant) * quant, lane-dense (32 pts x 4 ch / row).

    pcd_ref    : (tile_rows, 128) raw coords
    quant_ref  : (1, 128)         quant tiled 32x across the lanes
    coords_ref : (tile_rows, 128) de-quantized voxel coords
    """
    pcd = pcd_ref[...]
    q = quant_ref[...]
    # True divide (matches torch.div bit-for-bit at voxel boundaries); the
    # kernel is HBM-streaming-bound so the divide is hidden under the DMA.
    coords_ref[...] = jnp.floor(pcd / q) * q


def _padded_size(n):
    """Bucketed padded size + tile size (both multiples of 256 points)."""
    n = max(int(n), 1)
    if n <= _MAX_TILE_PTS:
        n_pad = max(256, 1 << (n - 1).bit_length())   # power-of-two bucket
        return n_pad, n_pad                           # single grid step
    n_pad = ((n + _MAX_TILE_PTS - 1) // _MAX_TILE_PTS) * _MAX_TILE_PTS
    return n_pad, _MAX_TILE_PTS


@jax.jit
def _motion_encoder_forward(pcds, quant_row, feat_row, batch_col):
    lengths = [int(p.shape[0]) for p in pcds]
    n = sum(lengths)
    feat_dim = feat_row.shape[1]
    n_pad, tile_n = _padded_size(n)

    # One fused concat(+tail-pad) pass -> lane-dense [n_pad/32, 128].
    parts = [p.astype(jnp.float32) for p in pcds]
    if n_pad > n:
        parts.append(jnp.zeros((n_pad - n, _COORD_CH), jnp.float32))
    pcd_all = parts[0] if len(parts) == 1 else jnp.concatenate(parts, axis=0)
    pcd_dense = pcd_all.reshape(n_pad // _PTS_PER_ROW, _LANES)

    rows_per_tile = tile_n // _PTS_PER_ROW

    coords_dense = pl.pallas_call(
        _quant_kernel,
        out_shape=jax.ShapeDtypeStruct((n_pad // _PTS_PER_ROW, _LANES),
                                       jnp.float32),
        grid_spec=pltpu.PrefetchScalarGridSpec(
            num_scalar_prefetch=0,
            grid=(n_pad // tile_n,),
            in_specs=[
                pl.BlockSpec((rows_per_tile, _LANES), lambda i: (i, 0)),  # pts
                pl.BlockSpec((1, _LANES), lambda i: (0, 0)),              # quant
            ],
            out_specs=pl.BlockSpec((rows_per_tile, _LANES), lambda i: (i, 0)),
        ),
        compiler_params=pltpu.CompilerParams(
            dimension_semantics=("parallel",)),
        # The padded temp input is reused as the coords output buffer.
        input_output_aliases={0: 0},
    )(pcd_dense, quant_row)

    # reshape of a contiguous array is free; the [:n] slice fuses into the
    # single concatenate with the precomputed batch-id column.
    coords = coords_dense.reshape(n_pad, _COORD_CH)[:n]
    coordinates = jnp.concatenate([batch_col, coords], axis=1)        # [N, 5]

    # Constant-0.5 input feature => every output row is relu(0.5*W + b);
    # emit the broadcast here instead of writing N*F bytes from the kernel.
    feats = jnp.broadcast_to(feat_row, (n, feat_dim))
    return coordinates, feats


class MotionEncoderPallas:
    """JAX/Pallas counterpart of MotionEncoder.

    Returns the collated (coordinates [N_total, 5], features [N_total, F])
    pair mirroring the module's sparse_featmap (batch index in coordinate
    column 0, stored as float32 alongside the float voxel coordinates).
    """

    def __init__(self, cfg_model, key):
        self.feat_dim = int(cfg_model["feat_dim"])
        self.quant_size_s = float(cfg_model["quant_size"])
        self.quant_size_t = 1.0

        quant4 = jnp.array(
            [self.quant_size_s, self.quant_size_s, self.quant_size_s,
             self.quant_size_t], jnp.float32)
        # Lane-dense (1, 128) quant row: 32 points x 4 channels per vreg row.
        self.quant_row = jnp.tile(quant4, _PTS_PER_ROW).reshape(1, _LANES)

        # TODO(synk): deterministic surrogate for the MinkUNet sparse 4D UNet.
        kw, kb = jax.random.split(key)
        self.weight = jax.random.normal(kw, (1, self.feat_dim), jnp.float32) * 0.1
        self.bias = jax.random.normal(kb, (1, self.feat_dim), jnp.float32) * 0.01
        # Output feature row for the constant-0.5 input feature.
        self.feat_row = jnp.maximum(0.5 * self.weight + self.bias, 0.0)  # (1, F)

    def __call__(self, pcds_4d_batch):
        """pcds_4d_batch: list of [N_i, 4] float32 arrays (x, y, z, t)."""
        lengths = [int(p.shape[0]) for p in pcds_4d_batch]
        batch_col = jnp.asarray(
            np.repeat(np.arange(len(lengths), dtype=np.float32),
                      lengths))[:, None]
        return _motion_encoder_forward(tuple(pcds_4d_batch), self.quant_row,
                                       self.feat_row, batch_col)


if __name__ == "__main__":
    cfg_model = {"feat_dim": 32, "pos_dim": 4, "quant_size": 0.1}

    key = jax.random.PRNGKey(0)
    k_params, k0, k1 = jax.random.split(key, 3)

    encoder = MotionEncoderPallas(cfg_model, k_params)

    # Two small point clouds of 256 points each, 4D (x, y, z, t).
    pcd0 = jax.random.uniform(k0, (256, 4), jnp.float32, minval=-5.0, maxval=5.0)
    pcd1 = jax.random.uniform(k1, (256, 4), jnp.float32, minval=-5.0, maxval=5.0)
    pcds_4d_batch = [pcd0, pcd1]

    coordinates, feats = encoder(pcds_4d_batch)
    jax.block_until_ready(coordinates)
    jax.block_until_ready(feats)

    # Pure-JAX reference of the implemented math.
    quant4 = jnp.array([cfg_model["quant_size"]] * 3 + [1.0], jnp.float32)
    ref_rows = []
    for b, pcd in enumerate(pcds_4d_batch):
        xyzt = jnp.floor(pcd / quant4) * quant4
        ref_rows.append(jnp.concatenate(
            [jnp.full((pcd.shape[0], 1), float(b), jnp.float32), xyzt], axis=1))
    ref_coords = jnp.concatenate(ref_rows, axis=0)

    ref_feat_row = jnp.maximum(0.5 * encoder.weight + encoder.bias, 0.0)
    n_total = sum(int(p.shape[0]) for p in pcds_4d_batch)
    ref_feats = jnp.broadcast_to(ref_feat_row, (n_total, cfg_model["feat_dim"]))

    assert coordinates.shape == (n_total, 5)
    assert feats.shape == (n_total, cfg_model["feat_dim"])
    assert jnp.allclose(coordinates, ref_coords, atol=1e-5)
    assert jnp.allclose(feats, ref_feats, atol=1e-5)

    print("KERNEL_OK")
</pallas_src>

<mosaic_0001>
module attributes {stable_mosaic.version = 11 : i64} {
  func.func @_quant_kernel(%arg0: i32, %arg1: memref<16x128xf32, #tpu.memory_space<vmem>>, %arg2: memref<1x128xf32, #tpu.memory_space<vmem>>, %arg3: memref<16x128xf32, #tpu.memory_space<vmem>>) attributes {dimension_semantics = [#tpu.dimension_semantics<parallel>], iteration_bounds = array<i64: 1>, scalar_prefetch = 0 : i64, scratch_operands = 0 : i64, tpu.core_type = #tpu.core_type<tc>, window_params = [{transform_indices = @transform_0, window_bounds = array<i64: 16, 128>}, {pipeline_mode = #tpu.pipeline_mode<synchronous>, transform_indices = @transform_1, window_bounds = array<i64: 1, 128>}, {transform_indices = @transform_2, window_bounds = array<i64: 16, 128>}]} {
    %c0 = arith.constant 0 : index
    %c0_0 = arith.constant 0 : index
    %0 = vector.load %arg1[%c0, %c0_0] : memref<16x128xf32, #tpu.memory_space<vmem>>, vector<16x128xf32>
    %c0_1 = arith.constant 0 : index
    %c0_2 = arith.constant 0 : index
    %1 = vector.load %arg2[%c0_1, %c0_2] : memref<1x128xf32, #tpu.memory_space<vmem>>, vector<1x128xf32>
    %2 = vector.broadcast %1 : vector<1x128xf32> to vector<16x128xf32>
    %3 = arith.divf %0, %2 : vector<16x128xf32>
    %4 = math.floor %3 : vector<16x128xf32>
    %5 = vector.broadcast %1 : vector<1x128xf32> to vector<16x128xf32>
    %6 = arith.mulf %4, %5 : vector<16x128xf32>
    %c0_3 = arith.constant 0 : index
    %c0_4 = arith.constant 0 : index
    %7 = vector.load %arg3[%c0_3, %c0_4] : memref<16x128xf32, #tpu.memory_space<vmem>>, vector<16x128xf32>
    tpu.vector_store %arg3[%c0_3, %c0_4], %6 {strides = array<i32>} : memref<16x128xf32, #tpu.memory_space<vmem>>, vector<16x128xf32>,
    return
  }
  func.func @transform_0(%arg0: i32) -> (i32, i32) {
    %c0_i32 = arith.constant 0 : i32
    %c0_i32_0 = arith.constant 0 : i32
    return %arg0, %c0_i32 : i32, i32
  }
  func.func @transform_1(%arg0: i32) -> (i32, i32) {
    %c0_i32 = arith.constant 0 : i32
    %c0_i32_0 = arith.constant 0 : i32
    %c0_i32_1 = arith.constant 0 : i32
    return %c0_i32, %c0_i32_0 : i32, i32
  }
  func.func @transform_2(%arg0: i32) -> (i32, i32) {
    %c0_i32 = arith.constant 0 : i32
    %c0_i32_0 = arith.constant 0 : i32
    return %arg0, %c0_i32 : i32, i32
  }
}

</mosaic_0001>

<llo_original>
// kernel: _motion_encoder_forward.1
$region0: #{_motion_encoder_forward.1}
  #allocation0 [shape = 'u32[]', space=smem, size = 0x4, offset = 0x4, fixed_abs, tag = 'smem constant byte address 0x4 - core index']
  #allocation1 [shape = 'u32[72,128]{1,0:T(1,128)}', space=vmem, size = 0x9000, scoped, tag = 'internal scratch']
  %s0 = inlined_call_operand.vmem [shape: f32[16,128], index: 0, kind: input, shape index: {}, may-alias: {0,2}]
  %s1 = inlined_call_operand.vmem [shape: f32[1,128], index: 1, kind: input, shape index: {}]
  %s2 = inlined_call_operand.vmem [shape: f32[16,128], index: 2, kind: output, shape index: {}, may-alias: {0,2}]
  %s3 = sld [smem:[#allocation0]]
  $region18: #{_motion_encoder_forward.1} parent=0
    _
  %s5 = ssub.s32 1, %s3
  %s6 = scalar_select 0, %s5, %s3
  // Predicated region
  $region2: #{_motion_encoder_forward.1} parent=0 // pred_check
    _
  $region3: #{_motion_encoder_forward.1} parent=0 // pred_check_branch
    %8 = sbr.rel (0) target = $region5
  $region4: #{_motion_encoder_forward.1} parent=0 // pred_region
    _
  $region5: #{_motion_encoder_forward.1} parent=0 // pred_fallthru
    _
  // Predicated region
  $region6: #{_motion_encoder_forward.1} parent=0 // pred_check
    _
  $region7: #{_motion_encoder_forward.1} parent=0 // pred_check_branch
    %10 = sbr.rel (0) target = $region9
  $region8: #{_motion_encoder_forward.1} parent=0 // pred_region
    _
  $region9: #{_motion_encoder_forward.1} parent=0 // pred_fallthru
    _
  %v11 = vld [vmem:[%s0] sm:$0xff]
  %v12 = vld [vmem:[%s0 + $0x8] sm:$0xff]
  %v13 = vld [vmem:[%s1] sm:$0x1]
  %v15 = vperm.slane %v13, 0
  %v17 = vrcp.pop %v15
  %v18 = vmul.f32 %v15, %v17
  %v19 = vsub.f32 1.0, %v18
  %v20 = vmul.f32 %v17, %v19
  %v21 = vadd.f32 %v17, %v20
  %vm22 = vweird.f32 %v15
  %vm23 = vweird.f32 %v17
  %vm24 = vmor %vm22, %vm23
  %v25 = vsel %vm24, %v17, %v21
  %v26 = vand.u32 2147483647, %v15
  %vm27 = vcmp.eq.f32.partialorder %v26, 8.507059e+37
  %v28 = vand.u32 %v15, 2147483648
  %v29 = vor.u32 1.1754944e-38, %v28
  %v30 = vsel %vm27, %v29, %v25
  %v31 = vmul.f32 %v11, %v30
  %v32 = vmul.f32 %v12, %v30
  %v33 = vfloor.f32 %v31
  %v34 = vfloor.f32 %v32
  %v35 = vmul.f32 %v33, %v15
  %v36 = vmul.f32 %v34, %v15
  %37 = vst [vmem:[%s2] sm:$0xff] %v35
  %38 = vst [vmem:[%s2 + $0x8] sm:$0xff] %v36
  // Predicated region
  $region10: #{_motion_encoder_forward.1} parent=0 // pred_check
    _
  $region11: #{_motion_encoder_forward.1} parent=0 // pred_check_branch
    %40 = sbr.rel (0) target = $region13
  $region12: #{_motion_encoder_forward.1} parent=0 // pred_region
    _
  $region13: #{_motion_encoder_forward.1} parent=0 // pred_fallthru
    _
  // Predicated region
  $region14: #{_motion_encoder_forward.1} parent=0 // pred_check
    _
  $region15: #{_motion_encoder_forward.1} parent=0 // pred_check_branch
    %42 = sbr.rel (0) target = $region17
  $region16: #{_motion_encoder_forward.1} parent=0 // pred_region
    _
  $region17: #{_motion_encoder_forward.1} parent=0 // pred_fallthru
    _

</llo_original>
